<compile_context>
chip_gen: v5e
topology: v5e:2x2
jax: 0.10.0
libtpu: 0.0.40
codegen_flags: <defaults>
</compile_context>

<pallas_src>
import jax
import jax.numpy as jnp
from jax.experimental import pallas as pl
from jax.experimental.pallas import tpu as pltpu


# ----------------------------------------------------------------------------
# Kernel
# ----------------------------------------------------------------------------
def resblock_kernel(x_ref, a_ref, w1x_ref, wa_ref, w2h_ref, b1_ref, b2_ref,
                    o_ref):
    x = x_ref[...]                               # (TB, H)   f32
    a = a_ref[...]                               # (TB, Ap)  f32
    H = x.shape[-1]

    cd = w1x_ref.dtype                           # MXU compute dtype (bf16/f32)

    # a's contribution to BOTH dense layers with a single small-K matmul:
    #   a @ [W1a^T | W2a^T]  ->  (TB, 2H), f32 accumulation.
    a_contrib = jnp.dot(a.astype(cd), wa_ref[...],
                        preferred_element_type=jnp.float32)

    # dense1(cat([x, a])) = x @ W1x^T + a @ W1a^T + b1
    h = (jnp.dot(x.astype(cd), w1x_ref[...],
                 preferred_element_type=jnp.float32)
         + a_contrib[:, :H] + b1_ref[...])
    # leaky_relu (negative_slope = 0.01): single vmax in the f32 epilogue.
    h = jnp.maximum(h, 0.01 * h)

    # dense2(cat([h, a])) = h @ W2h^T + a @ W2a^T + b2
    res = (jnp.dot(h.astype(cd), w2h_ref[...],
                   preferred_element_type=jnp.float32)
           + a_contrib[:, H:] + b2_ref[...])

    # residual add in f32
    o_ref[...] = (x + res).astype(o_ref.dtype)


# ----------------------------------------------------------------------------
# Init-time parameter prep (NOT per forward step)
# ----------------------------------------------------------------------------
def _round_up(x, m):
    return ((x + m - 1) // m) * m


def prepare_resblock_params(w1, b1, w2, b2, compute_dtype=jnp.bfloat16):
    """Transpose/split/pad the PyTorch-layout (out, in) weights once and cast
    them to the MXU compute dtype."""
    H = w1.shape[0]
    A = w1.shape[1] - H
    A_pad = _round_up(max(A, 1), 8)              # sublane-align the fused K dim

    w1x = jnp.asarray(w1[:, :H].T, dtype=compute_dtype)           # (H, H)
    w2h = jnp.asarray(w2[:, :H].T, dtype=compute_dtype)           # (H, H)
    wa = jnp.concatenate([w1[:, H:].T, w2[:, H:].T], axis=1)      # (A, 2H)
    if A_pad != A:
        wa = jnp.pad(wa, ((0, A_pad - A), (0, 0)))                # zero rows
    wa = jnp.asarray(wa, dtype=compute_dtype)                     # (A_pad, 2H)

    b1_2d = jnp.asarray(b1, jnp.float32).reshape(1, H)
    b2_2d = jnp.asarray(b2, jnp.float32).reshape(1, H)
    return {"w1x": w1x, "wa": wa, "w2h": w2h, "b1": b1_2d, "b2": b2_2d}


# ----------------------------------------------------------------------------
# VMEM sizing helpers
# ----------------------------------------------------------------------------
def _vmem_budget_and_limit():
    """Generation-aware VMEM budget / vmem_limit_bytes.

    v5e/v6e: 128 MiB physical -> ~96 MiB budget, 110 MiB limit.
    v7x (or detection failure): 64 MiB physical -> 40 MiB budget, 48 MiB limit.
    """
    try:
        cap = int(pltpu.get_tpu_info().vmem_capacity_bytes)
    except Exception:                            # non-TPU / old API: be safe
        cap = 64 * 1024 * 1024
    if cap >= 128 * 1024 * 1024:
        return 96 * 1024 * 1024, 110 * 1024 * 1024
    return 40 * 1024 * 1024, 48 * 1024 * 1024


def _pick_batch_tile(B, H, A_pad, w_bytes, budget_bytes):
    """Largest batch tile whose footprint fits ~80% of the VMEM budget.

    Footprint = resident weights counted x2 (Pallas double-buffers even
    constant-index inputs) + double-buffered x/a/out tiles + f32 intermediates
    (a_contrib (TB,2H), h, res) + compute-dtype cast temporaries of x/a/h.
    """
    w_foot = 2 * ((2 * H * H + A_pad * 2 * H) * w_bytes + 2 * H * 4)

    def tile_foot(tb):
        io = 2 * tb * (2 * H + A_pad) * 4            # x, a in + out (x2 bufs)
        f32_tmp = tb * 4 * H * 4                     # a_contrib(2H) + h + res
        cast_tmp = tb * (2 * H + A_pad) * w_bytes    # x/a/h casts for the MXU
        return io + f32_tmp + cast_tmp

    usable = int(budget_bytes * 0.8)                 # ~20% compiler headroom

    if B >= 128:                                     # full 128-row MXU passes
        cands = [c for c in (2048, 1024, 768, 512, 384, 256, 128) if c <= B]
        cands = cands or [128]
    elif B >= 8:
        cands = [max(8, (B // 8) * 8)]
    else:
        cands = [B]

    for tb in cands:
        if w_foot + tile_foot(tb) <= usable:
            return tb
    return cands[-1]


# ----------------------------------------------------------------------------
# Forward wrapper
# ----------------------------------------------------------------------------
def resblock_forward(x, a, params, *, batch_tile=None, alias_output_to_x=True):
    """x: (B, H) f32, a: (B, A) f32, params from prepare_resblock_params.

    With alias_output_to_x=True, x's HBM buffer is donated to the output and
    must not be read afterwards (use False for training graphs reusing x).
    """
    B, H = x.shape
    A = a.shape[-1]
    w1x, wa, w2h = params["w1x"], params["wa"], params["w2h"]
    b1, b2 = params["b1"], params["b2"]
    w_bytes = jnp.dtype(w1x.dtype).itemsize

    # Pad a's feature dim to match the padded fused action weight (zero rows
    # in wa make the padded columns inert).
    A_pad = wa.shape[0]
    assert A_pad >= A, "params were prepared for a smaller action_dim"
    if A_pad != A:
        a = jnp.pad(a, ((0, 0), (0, A_pad - A)))

    budget_bytes, vmem_limit_bytes = _vmem_budget_and_limit()

    TB = batch_tile if batch_tile is not None else _pick_batch_tile(
        B, H, A_pad, w_bytes, budget_bytes)
    # Ensure >= 2 grid steps (both v7x TensorCores busy) whenever that keeps
    # the tile a full multiple of 128; negligible cost on single-TC chips.
    if batch_tile is None and B >= 256:
        TB = min(TB, max(128, _round_up(pl.cdiv(B, 2), 128)))
    grid = (pl.cdiv(B, TB),)

    def row_spec(shape):                         # tiled along the batch axis
        return pl.BlockSpec(shape, lambda i: (i, 0))

    def const_spec(shape):                       # resident across batch tiles
        return pl.BlockSpec(shape, lambda i: (0, 0))

    flops = 4 * B * H * (H + A_pad) + 6 * B * H
    bytes_accessed = ((x.size + B * A_pad + B * H) * 4
                      + (w1x.size + wa.size + w2h.size) * w_bytes
                      + (b1.size + b2.size) * 4)

    return pl.pallas_call(
        resblock_kernel,
        out_shape=jax.ShapeDtypeStruct((B, H), x.dtype),
        grid=grid,
        in_specs=[
            row_spec((TB, H)),          # x
            row_spec((TB, A_pad)),      # a (zero-padded)
            const_spec((H, H)),         # W1x^T
            const_spec((A_pad, 2 * H)),  # [W1a^T | W2a^T] (zero-padded rows)
            const_spec((H, H)),         # W2h^T
            const_spec((1, H)),         # b1
            const_spec((1, H)),         # b2
        ],
        out_specs=row_spec((TB, H)),
        input_output_aliases=({0: 0} if alias_output_to_x else {}),
        cost_estimate=pl.CostEstimate(flops=flops, transcendentals=0,
                                      bytes_accessed=bytes_accessed),
        compiler_params=pltpu.CompilerParams(
            dimension_semantics=("parallel",),
            vmem_limit_bytes=vmem_limit_bytes,
        ),
    )(x, a, w1x, wa, w2h, b1, b2)


# ----------------------------------------------------------------------------
# Pure-JAX reference
# ----------------------------------------------------------------------------
def resblock_reference(x, a, w1, b1, w2, b2):
    hp = jax.lax.Precision.HIGHEST
    xa = jnp.concatenate([x, a], axis=-1)
    h = jnp.dot(xa, w1.T, precision=hp) + b1
    h = jnp.where(h > 0, h, 0.01 * h)
    ha = jnp.concatenate([h, a], axis=-1)
    return x + jnp.dot(ha, w2.T, precision=hp) + b2


if __name__ == "__main__":
    B, H, A = 16, 128, 6   # hidden=128 keeps all tiles lane-dense

    key = jax.random.PRNGKey(0)
    kx, ka, kw1, kb1, kw2, kb2 = jax.random.split(key, 6)

    x = jax.random.normal(kx, (B, H), dtype=jnp.float32)
    a = jax.random.normal(ka, (B, A), dtype=jnp.float32)

    # nn.Linear-style init: uniform(-1/sqrt(fan_in), 1/sqrt(fan_in)).
    bound = float((H + A) ** -0.5)
    w1 = jax.random.uniform(kw1, (H, H + A), jnp.float32, -bound, bound)
    b1 = jax.random.uniform(kb1, (H,), jnp.float32, -bound, bound)
    w2 = jax.random.uniform(kw2, (H, H + A), jnp.float32, -bound, bound)
    b2 = jax.random.uniform(kb2, (H,), jnp.float32, -bound, bound)

    ref = jax.block_until_ready(resblock_reference(x, a, w1, b1, w2, b2))

    # 1) f32 compute path (no output aliasing so x stays valid): tight check.
    params_f32 = prepare_resblock_params(w1, b1, w2, b2,
                                         compute_dtype=jnp.float32)
    out_f32 = jax.block_until_ready(
        resblock_forward(x, a, params_f32, alias_output_to_x=False))
    assert out_f32.shape == (B, H)
    assert jnp.allclose(out_f32, ref, atol=1e-4, rtol=1e-4), \
        "f32 kernel mismatch vs reference"

    # 2) Production bf16-MXU path (weights prepared once, x aliased to the
    #    output; x must not be read after this call).
    params_bf16 = prepare_resblock_params(w1, b1, w2, b2,
                                          compute_dtype=jnp.bfloat16)
    out = jax.block_until_ready(resblock_forward(x, a, params_bf16))
    assert out.shape == (B, H)
    # bf16 matmul inputs with f32 accumulation: expect ~1e-2 relative error.
    assert jnp.allclose(out, ref, atol=5e-2, rtol=5e-2), \
        "bf16 kernel mismatch vs reference"

    print("KERNEL_OK")
</pallas_src>

<mosaic_0001>
module attributes {stable_mosaic.version = 11 : i64} {
  func.func @resblock_kernel(%arg0: i32, %arg1: memref<16x128xf32, #tpu.memory_space<vmem>>, %arg2: memref<16x8xf32, #tpu.memory_space<vmem>>, %arg3: memref<128x128xf32, #tpu.memory_space<vmem>>, %arg4: memref<8x256xf32, #tpu.memory_space<vmem>>, %arg5: memref<128x128xf32, #tpu.memory_space<vmem>>, %arg6: memref<1x128xf32, #tpu.memory_space<vmem>>, %arg7: memref<1x128xf32, #tpu.memory_space<vmem>>, %arg8: memref<16x128xf32, #tpu.memory_space<vmem>>) attributes {dimension_semantics = [#tpu.dimension_semantics<parallel>], iteration_bounds = array<i64: 1>, scalar_prefetch = 0 : i64, scratch_operands = 0 : i64, tpu.core_type = #tpu.core_type<tc>, window_params = [{transform_indices = @transform_0, window_bounds = array<i64: 16, 128>}, {transform_indices = @transform_1, window_bounds = array<i64: 16, 8>}, {pipeline_mode = #tpu.pipeline_mode<synchronous>, transform_indices = @transform_2, window_bounds = array<i64: 128, 128>}, {pipeline_mode = #tpu.pipeline_mode<synchronous>, transform_indices = @transform_3, window_bounds = array<i64: 8, 256>}, {pipeline_mode = #tpu.pipeline_mode<synchronous>, transform_indices = @transform_4, window_bounds = array<i64: 128, 128>}, {pipeline_mode = #tpu.pipeline_mode<synchronous>, transform_indices = @transform_5, window_bounds = array<i64: 1, 128>}, {pipeline_mode = #tpu.pipeline_mode<synchronous>, transform_indices = @transform_6, window_bounds = array<i64: 1, 128>}, {transform_indices = @transform_7, window_bounds = array<i64: 16, 128>}]} {
    %c0 = arith.constant 0 : index
    %c0_0 = arith.constant 0 : index
    %0 = vector.load %arg1[%c0, %c0_0] : memref<16x128xf32, #tpu.memory_space<vmem>>, vector<16x128xf32>
    %c0_1 = arith.constant 0 : index
    %c0_2 = arith.constant 0 : index
    %1 = vector.load %arg2[%c0_1, %c0_2] : memref<16x8xf32, #tpu.memory_space<vmem>>, vector<16x8xf32>
    %c0_3 = arith.constant 0 : index
    %c0_4 = arith.constant 0 : index
    %2 = vector.load %arg4[%c0_3, %c0_4] : memref<8x256xf32, #tpu.memory_space<vmem>>, vector<8x256xf32>
    %cst = arith.constant dense<0.000000e+00> : vector<16x256xf32>
    %3 = tpu.matmul %1, %2, %cst {dimension_numbers = #tpu.dot_dimension_numbers<[1], [0], [0], [1], [0, 0, 1, 1], [], []>} : vector<16x8xf32>, vector<8x256xf32>, vector<16x256xf32> -> vector<16x256xf32>
    %c0_5 = arith.constant 0 : index
    %c0_6 = arith.constant 0 : index
    %4 = vector.load %arg3[%c0_5, %c0_6] : memref<128x128xf32, #tpu.memory_space<vmem>>, vector<128x128xf32>
    %cst_7 = arith.constant dense<0.000000e+00> : vector<16x128xf32>
    %5 = tpu.matmul %0, %4, %cst_7 {dimension_numbers = #tpu.dot_dimension_numbers<[1], [0], [0], [1], [0, 0, 1, 1], [], []>} : vector<16x128xf32>, vector<128x128xf32>, vector<16x128xf32> -> vector<16x128xf32>
    %6 = vector.extract_strided_slice %3 {offsets = [0, 0], sizes = [16, 128], strides = [1, 1]} : vector<16x256xf32> to vector<16x128xf32>
    %7 = arith.addf %5, %6 : vector<16x128xf32>
    %c0_8 = arith.constant 0 : index
    %c0_9 = arith.constant 0 : index
    %8 = vector.load %arg6[%c0_8, %c0_9] : memref<1x128xf32, #tpu.memory_space<vmem>>, vector<1x128xf32>
    %9 = vector.broadcast %8 : vector<1x128xf32> to vector<16x128xf32>
    %10 = arith.addf %7, %9 : vector<16x128xf32>
    %cst_10 = arith.constant 0.00999999977 : f32
    %11 = vector.broadcast %cst_10 : f32 to vector<16x128xf32>
    %12 = arith.mulf %11, %10 : vector<16x128xf32>
    %13 = arith.maximumf %10, %12 : vector<16x128xf32>
    %c0_11 = arith.constant 0 : index
    %c0_12 = arith.constant 0 : index
    %14 = vector.load %arg5[%c0_11, %c0_12] : memref<128x128xf32, #tpu.memory_space<vmem>>, vector<128x128xf32>
    %cst_13 = arith.constant dense<0.000000e+00> : vector<16x128xf32>
    %15 = tpu.matmul %13, %14, %cst_13 {dimension_numbers = #tpu.dot_dimension_numbers<[1], [0], [0], [1], [0, 0, 1, 1], [], []>} : vector<16x128xf32>, vector<128x128xf32>, vector<16x128xf32> -> vector<16x128xf32>
    %16 = vector.extract_strided_slice %3 {offsets = [0, 128], sizes = [16, 128], strides = [1, 1]} : vector<16x256xf32> to vector<16x128xf32>
    %17 = arith.addf %15, %16 : vector<16x128xf32>
    %c0_14 = arith.constant 0 : index
    %c0_15 = arith.constant 0 : index
    %18 = vector.load %arg7[%c0_14, %c0_15] : memref<1x128xf32, #tpu.memory_space<vmem>>, vector<1x128xf32>
    %19 = vector.broadcast %18 : vector<1x128xf32> to vector<16x128xf32>
    %20 = arith.addf %17, %19 : vector<16x128xf32>
    %21 = arith.addf %0, %20 : vector<16x128xf32>
    %c0_16 = arith.constant 0 : index
    %c0_17 = arith.constant 0 : index
    %22 = vector.load %arg8[%c0_16, %c0_17] : memref<16x128xf32, #tpu.memory_space<vmem>>, vector<16x128xf32>
    tpu.vector_store %arg8[%c0_16, %c0_17], %21 {strides = array<i32>} : memref<16x128xf32, #tpu.memory_space<vmem>>, vector<16x128xf32>,
    return
  }
  func.func @transform_0(%arg0: i32) -> (i32, i32) {
    %c0_i32 = arith.constant 0 : i32
    %c0_i32_0 = arith.constant 0 : i32
    return %arg0, %c0_i32 : i32, i32
  }
  func.func @transform_1(%arg0: i32) -> (i32, i32) {
    %c0_i32 = arith.constant 0 : i32
    %c0_i32_0 = arith.constant 0 : i32
    return %arg0, %c0_i32 : i32, i32
  }
  func.func @transform_2(%arg0: i32) -> (i32, i32) {
    %c0_i32 = arith.constant 0 : i32
    %c0_i32_0 = arith.constant 0 : i32
    %c0_i32_1 = arith.constant 0 : i32
    return %c0_i32, %c0_i32_0 : i32, i32
  }
  func.func @transform_3(%arg0: i32) -> (i32, i32) {
    %c0_i32 = arith.constant 0 : i32
    %c0_i32_0 = arith.constant 0 : i32
    %c0_i32_1 = arith.constant 0 : i32
    return %c0_i32, %c0_i32_0 : i32, i32
  }
  func.func @transform_4(%arg0: i32) -> (i32, i32) {
    %c0_i32 = arith.constant 0 : i32
    %c0_i32_0 = arith.constant 0 : i32
    %c0_i32_1 = arith.constant 0 : i32
    return %c0_i32, %c0_i32_0 : i32, i32
  }
  func.func @transform_5(%arg0: i32) -> (i32, i32) {
    %c0_i32 = arith.constant 0 : i32
    %c0_i32_0 = arith.constant 0 : i32
    %c0_i32_1 = arith.constant 0 : i32
    return %c0_i32, %c0_i32_0 : i32, i32
  }
  func.func @transform_6(%arg0: i32) -> (i32, i32) {
    %c0_i32 = arith.constant 0 : i32
    %c0_i32_0 = arith.constant 0 : i32
    %c0_i32_1 = arith.constant 0 : i32
    return %c0_i32, %c0_i32_0 : i32, i32
  }
  func.func @transform_7(%arg0: i32) -> (i32, i32) {
    %c0_i32 = arith.constant 0 : i32
    %c0_i32_0 = arith.constant 0 : i32
    return %arg0, %c0_i32 : i32, i32
  }
}

</mosaic_0001>

<llo_original>
// kernel: tpu_custom_call.1
$region0: #{tpu_custom_call.1}
  #allocation0 [shape = 'u32[]', space=smem, size = 0x4, offset = 0x4, fixed_abs, tag = 'smem constant byte address 0x4 - core index']
  #allocation1 [shape = 'u32[72,128]{1,0:T(1,128)}', space=vmem, size = 0x9000, scoped, tag = 'internal scratch']
  %s0 = inlined_call_operand.vmem [shape: f32[16,128], index: 0, kind: input, shape index: {}]
  %s1 = inlined_call_operand.vmem [shape: f32[16,8], index: 1, kind: input, shape index: {}]
  %s2 = inlined_call_operand.hbm [shape: f32[128,128], index: 2, kind: input, shape index: {}]
  %s3 = inlined_call_operand.hbm [shape: f32[8,256], index: 3, kind: input, shape index: {}]
  %s4 = inlined_call_operand.hbm [shape: f32[128,128], index: 4, kind: input, shape index: {}]
  %s5 = inlined_call_operand.vmem [shape: f32[1,128], index: 5, kind: input, shape index: {}]
  %s6 = inlined_call_operand.vmem [shape: f32[1,128], index: 6, kind: input, shape index: {}]
  %s7 = inlined_call_operand.hbm [shape: f32[16,128], index: 7, kind: output, shape index: {}]
  %s8 = sld [smem:[#allocation0]]
  $region50: #{tpu_custom_call.1} parent=0
    _
  %s10 = ssub.s32 1, %s8
  %s11 = scalar_select 0, %s10, %s8
  $region1: #{tpu_custom_call.1} parent=0
    #allocation2 [shape = 'u8[65536]{0}', space=vmem, size = 0x10000, scoped, tag = 'input window, operand 2, single buffered']
    #allocation3 [shape = 's32[1]{0}', space=sflag, size = 0x4, scoped, tag = 'scoped memory for tpu_custom_call.1']
    #allocation4 [shape = 's32[1]{0}', space=sflag, size = 0x4, scoped, tag = 'scoped memory for tpu_custom_call.1']
    #allocation5 [shape = 'u8[8192]{0}', space=vmem, size = 0x2000, scoped, tag = 'input window, operand 3, single buffered']
    #allocation6 [shape = 's32[1]{0}', space=sflag, size = 0x4, scoped, tag = 'scoped memory for tpu_custom_call.1']
    #allocation7 [shape = 'u8[65536]{0}', space=vmem, size = 0x10000, scoped, tag = 'input window, operand 4, single buffered']
    #allocation8 [shape = 'u8[8192]{0}', space=vmem, size = 0x2000, scoped, tag = 'output window, operand 0, single buffered']
    %12 = vsyncpa [#allocation3], 0
    %13 = vsyncpa [#allocation6], 0
    %14 = vsyncpa [#allocation4], 0
    // Predicated region
    $region2: #{tpu_custom_call.1} parent=1 // pred_check
      _
    $region3: #{tpu_custom_call.1} parent=1 // pred_check_branch
      %16 = sbr.rel (0) target = $region5
    $region4: #{tpu_custom_call.1} parent=1 // pred_region
      _
    $region5: #{tpu_custom_call.1} parent=1 // pred_fallthru
      _
    // Predicated region
    $region6: #{tpu_custom_call.1} parent=1 // pred_check
      _
    $region7: #{tpu_custom_call.1} parent=1 // pred_check_branch
      %18 = sbr.rel (0) target = $region9
    $region8: #{tpu_custom_call.1} parent=1 // pred_region
      _
    $region9: #{tpu_custom_call.1} parent=1 // pred_fallthru
      _
    // Predicated region
    $region10: #{tpu_custom_call.1} parent=1 // pred_check
      _
    $region11: #{tpu_custom_call.1} parent=1 // pred_check_branch
      %20 = sbr.rel (0) target = $region13
    $region12: #{tpu_custom_call.1} parent=1 // pred_region
      %22 = vsyncadd [#allocation3], 0
      %s23 = sshll.u32 %s2, 4
      %s24 = int_to_ptr.hbm [resolvable:$true] %s23
      %s25 = sshll.u32 [#allocation2], 4
      %s26 = int_to_ptr.vmem [resolvable:$true] %s25
      %31 = dma.hbm_to_vmem [thread:$0]  %s24, 2048, %s26, [#allocation3], 128, 128, 8
    $region13: #{tpu_custom_call.1} parent=1 // pred_fallthru
      _
    // Predicated region
    $region14: #{tpu_custom_call.1} parent=1 // pred_check
      _
    $region15: #{tpu_custom_call.1} parent=1 // pred_check_branch
      %33 = sbr.rel (0) target = $region17
    $region16: #{tpu_custom_call.1} parent=1 // pred_region
      %35 = vsyncadd [#allocation6], 0
      %s37 = sshll.u32 %s3, 4
      %s38 = int_to_ptr.hbm [resolvable:$true] %s37
      %s39 = sshll.u32 [#allocation5], 4
      %s40 = int_to_ptr.vmem [resolvable:$true] %s39
      %42 = dma.hbm_to_vmem [thread:$0]  %s38, 256, %s40, [#allocation6]
    $region17: #{tpu_custom_call.1} parent=1 // pred_fallthru
      _
    // Predicated region
    $region18: #{tpu_custom_call.1} parent=1 // pred_check
      _
    $region19: #{tpu_custom_call.1} parent=1 // pred_check_branch
      %44 = sbr.rel (0) target = $region21
    $region20: #{tpu_custom_call.1} parent=1 // pred_region
      %46 = vsyncadd [#allocation6], 0
      %s47 = sshll.u32 %s4, 4
      %s48 = int_to_ptr.hbm [resolvable:$true] %s47
      %s49 = sshll.u32 [#allocation7], 4
      %s50 = int_to_ptr.vmem [resolvable:$true] %s49
      %55 = dma.hbm_to_vmem [thread:$0]  %s48, 2048, %s50, [#allocation6], 128, 128, 8
    $region21: #{tpu_custom_call.1} parent=1 // pred_fallthru
      _
    // Predicated region
    $region22: #{tpu_custom_call.1} parent=1 // pred_check
      _
    $region23: #{tpu_custom_call.1} parent=1 // pred_check_branch
      %57 = sbr.rel (0) target = $region25
    $region24: #{tpu_custom_call.1} parent=1 // pred_region
      _
    $region25: #{tpu_custom_call.1} parent=1 // pred_fallthru
      _
    // Predicated region
    $region26: #{tpu_custom_call.1} parent=1 // pred_check
      _
    $region27: #{tpu_custom_call.1} parent=1 // pred_check_branch
      %59 = sbr.rel (0) target = $region29
    $region28: #{tpu_custom_call.1} parent=1 // pred_region
      _
    $region29: #{tpu_custom_call.1} parent=1 // pred_fallthru
      _
    // Predicated region
    $region30: #{tpu_custom_call.1} parent=1 // pred_check
      _
    $region31: #{tpu_custom_call.1} parent=1 // pred_check_branch
      %61 = sbr.rel (0) target = $region33
    $region32: #{tpu_custom_call.1} parent=1 // pred_region
      %63 = dma.done [#allocation3], 2048
    $region33: #{tpu_custom_call.1} parent=1 // pred_fallthru
      _
    // Predicated region
    $region34: #{tpu_custom_call.1} parent=1 // pred_check
      _
    $region35: #{tpu_custom_call.1} parent=1 // pred_check_branch
      %65 = sbr.rel (0) target = $region37
    $region36: #{tpu_custom_call.1} parent=1 // pred_region
      %67 = dma.done [#allocation6], 256
    $region37: #{tpu_custom_call.1} parent=1 // pred_fallthru
      _
    // Predicated region
    $region38: #{tpu_custom_call.1} parent=1 // pred_check
      _
    $region39: #{tpu_custom_call.1} parent=1 // pred_check_branch
      %69 = sbr.rel (0) target = $region41
    $region40: #{tpu_custom_call.1} parent=1 // pred_region
      %71 = dma.done [#allocation6], 2048
    $region41: #{tpu_custom_call.1} parent=1 // pred_fallthru
      _
    %v72 = vld [vmem:[%s0] sm:$0xff]
    %v73 = vld [vmem:[%s0 + $0x8] sm:$0xff]
    %v74 = vld [vmem:[%s1] sm:$0xff]
    %v75 = vld [vmem:[%s1 + $0x8] sm:$0xff]
    %v76 = vld [vmem:[#allocation5] sm:$0xff]
    %v77 = vld [vmem:[#allocation5 + $0x8] sm:$0xff]
    %vm78 = vcmask 64512
    %v80 = vsel %vm78, %v74, 0
    %v83 = vsel %vm78, %v75, 0
    %85 = vmatpush.msra.mxu0 0.0
    %86 = vmatpush.msra.mxu0 0.0
    %87 = vmatpush.msra.mxu0 0.0
    %88 = vmatpush.msra.mxu0 0.0
    %89 = vmatpush.msra.mxu0 0.0
    %90 = vmatpush.msra.mxu0 0.0
    %91 = vmatpush.msra.mxu0 0.0
    %92 = vmatpush.msra.mxu0 0.0
    %93 = vmatpush.msra.mxu0 0.0
    %94 = vmatpush.msra.mxu0 0.0
    %95 = vmatpush.msra.mxu0 0.0
    %96 = vmatpush.msra.mxu0 0.0
    %97 = vmatpush.msra.mxu0 0.0
    %98 = vmatpush.msra.mxu0 0.0
    %99 = vmatpush.msra.mxu0 0.0
    %100 = vmatpush.msra.mxu0 %v76
    %101 = vmatmul.f32.gmra.mxu0 %v80
    %v102 = vpop.f32.mrf.mxu0
    %v103 = vadd.f32 0.0, %v102
    %104 = vmatmul.f32.gmra.mxu0 %v83
    %v105 = vpop.f32.mrf.mxu0
    %v106 = vadd.f32 0.0, %v105
    %107 = vdwg.mxu0
    %108 = vmatpush.msra.mxu0 0.0
    %109 = vmatpush.msra.mxu0 0.0
    %110 = vmatpush.msra.mxu0 0.0
    %111 = vmatpush.msra.mxu0 0.0
    %112 = vmatpush.msra.mxu0 0.0
    %113 = vmatpush.msra.mxu0 0.0
    %114 = vmatpush.msra.mxu0 0.0
    %115 = vmatpush.msra.mxu0 0.0
    %116 = vmatpush.msra.mxu0 0.0
    %117 = vmatpush.msra.mxu0 0.0
    %118 = vmatpush.msra.mxu0 0.0
    %119 = vmatpush.msra.mxu0 0.0
    %120 = vmatpush.msra.mxu0 0.0
    %121 = vmatpush.msra.mxu0 0.0
    %122 = vmatpush.msra.mxu0 0.0
    %123 = vmatpush.msra.mxu0 %v77
    %124 = vmatmul.f32.gmra.mxu0 %v80
    %v125 = vpop.f32.mrf.mxu0
    %v126 = vadd.f32 0.0, %v125
    %127 = vmatmul.f32.gmra.mxu0 %v83
    %v128 = vpop.f32.mrf.mxu0
    %v129 = vadd.f32 0.0, %v128
    %130 = vdwg.mxu0
    %v131 = vld [vmem:[#allocation2] sm:$0xff]
    %v132 = vld [vmem:[#allocation2 + $0x8] sm:$0xff]
    %v133 = vld [vmem:[#allocation2 + $0x10] sm:$0xff]
    %v134 = vld [vmem:[#allocation2 + $0x18] sm:$0xff]
    %v135 = vld [vmem:[#allocation2 + $0x20] sm:$0xff]
    %v136 = vld [vmem:[#allocation2 + $0x28] sm:$0xff]
    %v137 = vld [vmem:[#allocation2 + $0x30] sm:$0xff]
    %v138 = vld [vmem:[#allocation2 + $0x38] sm:$0xff]
    %v139 = vld [vmem:[#allocation2 + $0x40] sm:$0xff]
    %v140 = vld [vmem:[#allocation2 + $0x48] sm:$0xff]
    %v141 = vld [vmem:[#allocation2 + $0x50] sm:$0xff]
    %v142 = vld [vmem:[#allocation2 + $0x58] sm:$0xff]
    %v143 = vld [vmem:[#allocation2 + $0x60] sm:$0xff]
    %v144 = vld [vmem:[#allocation2 + $0x68] sm:$0xff]
    %v145 = vld [vmem:[#allocation2 + $0x70] sm:$0xff]
    %v146 = vld [vmem:[#allocation2 + $0x78] sm:$0xff]
    %147 = vmatpush.msra.mxu0 %v146
    %148 = vmatpush.msra.mxu0 %v145
    %149 = vmatpush.msra.mxu0 %v144
    %150 = vmatpush.msra.mxu0 %v143
    %151 = vmatpush.msra.mxu0 %v142
    %152 = vmatpush.msra.mxu0 %v141
    %153 = vmatpush.msra.mxu0 %v140
    %154 = vmatpush.msra.mxu0 %v139
    %155 = vmatpush.msra.mxu0 %v138
    %156 = vmatpush.msra.mxu0 %v137
    %157 = vmatpush.msra.mxu0 %v136
    %158 = vmatpush.msra.mxu0 %v135
    %159 = vmatpush.msra.mxu0 %v134
    %160 = vmatpush.msra.mxu0 %v133
    %161 = vmatpush.msra.mxu0 %v132
    %162 = vmatpush.msra.mxu0 %v131
    %163 = vmatmul.f32.gmra.mxu0 %v72
    %v164 = vpop.f32.mrf.mxu0
    %v165 = vadd.f32 %v103, %v164
    %166 = vmatmul.f32.gmra.mxu0 %v73
    %v167 = vpop.f32.mrf.mxu0
    %v168 = vadd.f32 %v106, %v167
    %169 = vdwg.mxu0
    %v170 = vld [vmem:[%s5] sm:$0x1]
    %v172 = vperm.slane %v170, 0
    %v174 = vadd.f32 %v165, %v172
    %v175 = vadd.f32 %v168, %v172
    %v176 = vmul.f32 %v174, 0.01
    %v177 = vmul.f32 %v175, 0.01
    %v178 = vmax.f32 %v174, %v176
    %v179 = vmax.f32 %v175, %v177
    %v180 = vld [vmem:[#allocation7] sm:$0xff]
    %v181 = vld [vmem:[#allocation7 + $0x8] sm:$0xff]
    %v182 = vld [vmem:[#allocation7 + $0x10] sm:$0xff]
    %v183 = vld [vmem:[#allocation7 + $0x18] sm:$0xff]
    %v184 = vld [vmem:[#allocation7 + $0x20] sm:$0xff]
    %v185 = vld [vmem:[#allocation7 + $0x28] sm:$0xff]
    %v186 = vld [vmem:[#allocation7 + $0x30] sm:$0xff]
    %v187 = vld [vmem:[#allocation7 + $0x38] sm:$0xff]
    %v188 = vld [vmem:[#allocation7 + $0x40] sm:$0xff]
    %v189 = vld [vmem:[#allocation7 + $0x48] sm:$0xff]
    %v190 = vld [vmem:[#allocation7 + $0x50] sm:$0xff]
    %v191 = vld [vmem:[#allocation7 + $0x58] sm:$0xff]
    %v192 = vld [vmem:[#allocation7 + $0x60] sm:$0xff]
    %v193 = vld [vmem:[#allocation7 + $0x68] sm:$0xff]
    %v194 = vld [vmem:[#allocation7 + $0x70] sm:$0xff]
    %v195 = vld [vmem:[#allocation7 + $0x78] sm:$0xff]
    %196 = vmatpush.msra.mxu0 %v195
    %197 = vmatpush.msra.mxu0 %v194
    %198 = vmatpush.msra.mxu0 %v193
    %199 = vmatpush.msra.mxu0 %v192
    %200 = vmatpush.msra.mxu0 %v191
    %201 = vmatpush.msra.mxu0 %v190
    %202 = vmatpush.msra.mxu0 %v189
    %203 = vmatpush.msra.mxu0 %v188
    %204 = vmatpush.msra.mxu0 %v187
    %205 = vmatpush.msra.mxu0 %v186
    %206 = vmatpush.msra.mxu0 %v185
    %207 = vmatpush.msra.mxu0 %v184
    %208 = vmatpush.msra.mxu0 %v183
    %209 = vmatpush.msra.mxu0 %v182
    %210 = vmatpush.msra.mxu0 %v181
    %211 = vmatpush.msra.mxu0 %v180
    %212 = vmatmul.f32.gmra.mxu0 %v178
    %v213 = vpop.f32.mrf.mxu0
    %v214 = vadd.f32 %v126, %v213
    %215 = vmatmul.f32.gmra.mxu0 %v179
    %v216 = vpop.f32.mrf.mxu0
    %v217 = vadd.f32 %v129, %v216
    %218 = vdwg.mxu0
    %v219 = vld [vmem:[%s6] sm:$0x1]
    %v221 = vperm.slane %v219, 0
    %v223 = vadd.f32 %v214, %v221
    %v224 = vadd.f32 %v217, %v221
    %v225 = vadd.f32 %v72, %v223
    %v226 = vadd.f32 %v73, %v224
    %227 = vst [vmem:[#allocation8] sm:$0xff] %v225
    %228 = vst [vmem:[#allocation8 + $0x8] sm:$0xff] %v226
    // Predicated region
    $region42: #{tpu_custom_call.1} parent=1 // pred_check
      _
    $region43: #{tpu_custom_call.1} parent=1 // pred_check_branch
      %230 = sbr.rel (0) target = $region45
    $region44: #{tpu_custom_call.1} parent=1 // pred_region
      %232 = vsyncadd [#allocation4], 0
      %s233 = sshll.u32 [#allocation8], 4
      %s234 = int_to_ptr.vmem [resolvable:$true] %s233
      %s235 = sshll.u32 %s7, 4
      %s236 = int_to_ptr.hbm [resolvable:$true] %s235
      %241 = dma.vmem_to_hbm [thread:$0]  %s234, 256, %s236, [#allocation4], 128, 128, 8
    $region45: #{tpu_custom_call.1} parent=1 // pred_fallthru
      _
    // Predicated region
    $region46: #{tpu_custom_call.1} parent=1 // pred_check
      _
    $region47: #{tpu_custom_call.1} parent=1 // pred_check_branch
      %243 = sbr.rel (0) target = $region49
    $region48: #{tpu_custom_call.1} parent=1 // pred_region
      %245 = dma.done [#allocation4], 256
    $region49: #{tpu_custom_call.1} parent=1 // pred_fallthru
      _
    %246 = vsyncpa [#allocation3], 1
    %247 = vsyncpa [#allocation6], 1
    %248 = vsyncpa [#allocation4], 1

</llo_original>
